<compile_context>
chip_gen: v6e
topology: v6e:2x2x1
jax: 0.10.0
libtpu: 0.0.40
codegen_flags: <defaults>
</compile_context>

<pallas_src>
import functools

import jax
import jax.numpy as jnp
from jax.experimental import pallas as pl

_LANES = 128       # lane width: head classes are padded to this for dense stores
_N_STAGES = 3      # kernel arity is specialized to 3 stages / 3 heads


# ----------------------------------------------------------------------------
# Fused Pallas kernel: whole backbone + all heads in one body, 3 inputs total
# ----------------------------------------------------------------------------
def _fused_kernel(x_ref, w_ref, b_ref, out_ref):
    f32, bf16 = jnp.float32, jnp.bfloat16

    cin_pad, n = x_ref.shape                       # (padded Cin, B*HW), bf16
    c = w_ref.shape[0] // (2 * _N_STAGES)          # hidden channels (32)
    b = out_ref.shape[1]                           # batch
    hw = n // b                                    # spatial positions per sample

    # ---- static, tile-aligned slices out of the two packed slabs.
    w1t = w_ref[0 * c:1 * c, 0:cin_pad]            # (C, Cin_pad) bf16, stage-1 Wᵀ
    w2t = w_ref[1 * c:2 * c, 0:c]                  # (C, C)
    w3t = w_ref[2 * c:3 * c, 0:c]                  # (C, C)
    hw1 = w_ref[3 * c:4 * c, :]                    # (C, 128) head weights (padded)
    hw2 = w_ref[4 * c:5 * c, :]
    hw3 = w_ref[5 * c:6 * c, :]

    b1 = b_ref[0:c, 0:1]                           # (C, 1) f32 backbone bias cols
    b2 = b_ref[0:c, 1:2]
    b3 = b_ref[0:c, 2:3]
    hb1 = b_ref[c + 0:c + 1, :]                    # (1, 128) f32 head bias rows
    hb2 = b_ref[c + 1:c + 2, :]
    hb3 = b_ref[c + 2:c + 3, :]

    # ---- backbone in (C, N) layout: channels on sublanes, positions lane-dense.
    #      bf16 MXU operands, f32 accumulation; bias add + ReLU stay f32 (v5e-safe).
    x_bf = x_ref[...]                              # already bf16 (padded rows are 0)
    h1 = jnp.maximum(jnp.dot(w1t, x_bf, preferred_element_type=f32) + b1, 0.0)
    h1_bf = h1.astype(bf16)
    h2 = jnp.maximum(jnp.dot(w2t, h1_bf, preferred_element_type=f32) + b2, 0.0)
    h2_bf = h2.astype(bf16)
    h3 = jnp.maximum(jnp.dot(w3t, h2_bf, preferred_element_type=f32) + b3, 0.0)
    h3_bf = h3.astype(bf16)

    # ---- global average pool: exact {0,1} one-hot generated in-kernel (no
    #      O(B*N) HBM operand), contracted against the lane (position) dim of
    #      the activations (trans-B matmul); 1/HW applied in f32 -> exact mean.
    #      Relies on position n belonging to sample n // HW (sample-major flatten
    #      done by the wrapper).
    pos = jax.lax.broadcasted_iota(jnp.int32, (b, n), 1)
    smp = jax.lax.broadcasted_iota(jnp.int32, (b, n), 0)
    lo = smp * hw
    pool_t = jnp.where((pos >= lo) & (pos < lo + hw), 1.0, 0.0).astype(bf16)  # (B, N)
    dn = (((1,), (1,)), ((), ()))                  # contract lanes: (B,N)x(C,N)->(B,C)
    inv_hw = 1.0 / hw
    p1 = jax.lax.dot_general(pool_t, h1_bf, dn, preferred_element_type=f32) * inv_hw
    p2 = jax.lax.dot_general(pool_t, h2_bf, dn, preferred_element_type=f32) * inv_hw
    p3 = jax.lax.dot_general(pool_t, h3_bf, dn, preferred_element_type=f32) * inv_hw

    # ---- heads: lane-dense (B, 128) outputs (classes zero-padded to full lanes).
    o1 = jnp.dot(p1.astype(bf16), hw1, preferred_element_type=f32) + hb1
    o2 = jnp.dot(p2.astype(bf16), hw2, preferred_element_type=f32) + hb2
    o3 = jnp.dot(p3.astype(bf16), hw3, preferred_element_type=f32) + hb3

    out_ref[0] = o1
    out_ref[1] = o2
    out_ref[2] = o3


def _full_block(shape):
    """Full-array block (no grid): exempt from the (8,128) divisibility rule."""
    nd = len(shape)
    return pl.BlockSpec(shape, lambda *_: (0,) * nd)


@functools.partial(jax.jit, static_argnames=("n_classes",))
def _forward_all(x_nchw, w_slab, b_slab, *, n_classes):
    """Run the fused 3-stage / 3-head network; returns a (3, B, n_classes) array."""
    B, C, H, W = x_nchw.shape
    HW = H * W
    N = B * HW

    # NCHW -> (C, B*HW): channels on sublanes, positions lane-dense.
    # NOTE: column n = b*HW + h*W + w (sample-major); the in-kernel pooling
    # one-hot (n // HW == b) depends on exactly this flatten order.
    cin_pad = max(8, ((C + 7) // 8) * 8)
    x_cn = jnp.transpose(x_nchw, (1, 0, 2, 3)).reshape(C, N)
    x_pad = jnp.zeros((cin_pad, N), jnp.bfloat16).at[:C, :].set(
        x_cn.astype(jnp.bfloat16))

    out = pl.pallas_call(
        _fused_kernel,
        out_shape=jax.ShapeDtypeStruct((_N_STAGES, B, _LANES), jnp.float32),
        in_specs=[_full_block(x_pad.shape),
                  _full_block(w_slab.shape),
                  _full_block(b_slab.shape)],
        out_specs=_full_block((_N_STAGES, B, _LANES)),
        # Footprint ~0.1 MiB: well inside every generation's default scoped
        # VMEM, so no vmem_limit_bytes override is needed.
    )(x_pad, w_slab, b_slab)

    # Single slice back from the lane-padded width to n_classes.
    return out[:, :, :n_classes]


# ----------------------------------------------------------------------------
# Concrete early-exit model (mirrors EarlyExitingBase semantics, 'all' mode)
# ----------------------------------------------------------------------------
class EarlyExitNetPallas:
    def __init__(self, key, c_in=4, c_hidden=32, n_classes=10):
        self._mode = "all"                 # default mode in EarlyExitingBase.__init__
        self._confidence_threshold = None
        self._selected_head = -1
        self.n_stages = _N_STAGES
        self.n_classes = n_classes
        assert n_classes <= _LANES
        assert c_hidden % 8 == 0 and c_hidden <= _LANES
        assert c_in <= _LANES

        keys = jax.random.split(key, 4 * _N_STAGES)
        k = iter(keys)

        # Backbone: stage i is a 1x1 conv (matmul over channels) + ReLU.
        self.stage_w, self.stage_b = [], []
        cin = c_in
        for _ in range(_N_STAGES):
            self.stage_w.append(
                jax.random.normal(next(k), (cin, c_hidden), jnp.float32)
                * (1.0 / jnp.sqrt(cin)))
            self.stage_b.append(
                jax.random.normal(next(k), (1, c_hidden), jnp.float32) * 0.01)
            cin = c_hidden

        # Heads (one per stage; last one is the "final" head).
        self.head_w, self.head_b = [], []
        for _ in range(_N_STAGES):
            self.head_w.append(
                jax.random.normal(next(k), (c_hidden, n_classes), jnp.float32)
                * (1.0 / jnp.sqrt(c_hidden)))
            self.head_b.append(
                jax.random.normal(next(k), (1, n_classes), jnp.float32) * 0.01)

        # ---- pack all MXU weights into ONE bf16 slab (cast once, here), and all
        # biases into ONE f32 slab.  3 kernel inputs total instead of 14.
        C = c_hidden
        w_slab = jnp.zeros((2 * _N_STAGES * C, _LANES), jnp.float32)
        w_slab = w_slab.at[0 * C:1 * C, 0:c_in].set(self.stage_w[0].T)   # (C, Cin)
        w_slab = w_slab.at[1 * C:2 * C, 0:C].set(self.stage_w[1].T)      # (C, C)
        w_slab = w_slab.at[2 * C:3 * C, 0:C].set(self.stage_w[2].T)      # (C, C)
        for i in range(_N_STAGES):
            w_slab = w_slab.at[(3 + i) * C:(4 + i) * C, 0:n_classes].set(
                self.head_w[i])                                          # (C, ncls)
        self._w_slab = w_slab.astype(jnp.bfloat16)

        b_slab = jnp.zeros((C + _N_STAGES, _LANES), jnp.float32)
        for i in range(_N_STAGES):
            b_slab = b_slab.at[0:C, i].set(self.stage_b[i][0])           # bias cols
            b_slab = b_slab.at[C + i, 0:n_classes].set(self.head_b[i][0])  # bias rows
        self._b_slab = b_slab

    # --- EarlyExitingBase API parity -------------------------------------
    @property
    def number_of_attached_heads(self):
        return self.n_stages - 1

    @property
    def number_of_heads(self):
        return self.number_of_attached_heads + 1

    @property
    def number_of_classes(self):
        return self.n_classes

    @property
    def _head_modules(self):
        return list(zip(self.head_w, self.head_b))

    @property
    def _core_modules(self):
        return list(zip(self.stage_w, self.stage_b))

    @property
    def mode(self):
        return self._mode

    def all_mode(self):
        self._mode = "all"

    def select_head(self, head_idx):
        assert 0 <= head_idx < self.number_of_heads
        self._mode = "selected"
        self._selected_head = head_idx

    def set_threshold(self, threshold):
        self._mode = "threshold"
        self._confidence_threshold = threshold

    # --- forward ----------------------------------------------------------
    def forward_generator(self, x_input):
        """Generator matching the PyTorch `fg.send(x)` protocol.  All heads are
        produced by one fused, jitted pallas_call on the first send."""
        out_all = _forward_all(x_input, self._w_slab, self._b_slab,
                               n_classes=self.n_classes)
        for h in range(_N_STAGES):
            # TODO(synk): per-stage feature maps are not materialized by the
            # fused kernel (only head outputs, which is all 'all' mode uses).
            _ = yield (None, out_all[h])

    def forward(self, x_input):
        assert self._mode in {"selected", "threshold", "all", "patience"}
        fg, x, head_outputs = self.forward_generator(x_input), None, []
        if self._mode == "all":
            while True:
                try:
                    x, head_output = fg.send(x)
                except StopIteration:
                    assert len(head_outputs) == self.number_of_heads
                    return head_outputs
                head_outputs.append(head_output)
        else:
            # TODO(synk): 'threshold' / 'selected' / 'patience' modes involve
            # per-sample data-dependent early exit (host-side control flow in
            # PyTorch); only the default 'all' mode is implemented here.
            raise NotImplementedError


# ----------------------------------------------------------------------------
# Pure-JAX reference (f32 throughout) for a correctness check
# ----------------------------------------------------------------------------
def _reference_forward(x_nchw, model):
    B, C, H, W = x_nchw.shape
    x = jnp.transpose(x_nchw, (0, 2, 3, 1)).reshape(B, H * W, C)
    outs = []
    for i in range(model.n_stages):
        x = jax.nn.relu(
            jnp.einsum("bsc,cd->bsd", x, model.stage_w[i]) + model.stage_b[i])
        pooled = jnp.mean(x, axis=1)
        outs.append(pooled @ model.head_w[i] + model.head_b[i])
    return outs


# ----------------------------------------------------------------------------
# main
# ----------------------------------------------------------------------------
if __name__ == "__main__":
    key = jax.random.PRNGKey(0)
    k_params, k_x = jax.random.split(key)

    B, C_in, H, W = 2, 4, 8, 8
    model = EarlyExitNetPallas(k_params, c_in=C_in, c_hidden=32, n_classes=10)

    x = jax.random.normal(k_x, (B, C_in, H, W), jnp.float32)  # NCHW like PyTorch

    head_outputs = model.forward(x)
    head_outputs = jax.block_until_ready(head_outputs)

    assert len(head_outputs) == model.number_of_heads
    ref_outputs = _reference_forward(x, model)
    for out, ref in zip(head_outputs, ref_outputs):
        assert out.shape == (B, model.number_of_classes)
        assert out.dtype == jnp.float32
        assert bool(jnp.all(jnp.isfinite(out)))
        # bf16 MXU operands (incl. bf16 input cast) with f32 accumulation and
        # exact f32 1/HW pooling scale -> tightened tolerance vs the old 1e-1.
        assert bool(jnp.allclose(out, ref, atol=3e-2, rtol=3e-2)), (
            jnp.max(jnp.abs(out - ref)))

    print("KERNEL_OK")
</pallas_src>

<mosaic_0001>
module attributes {stable_mosaic.version = 11 : i64} {
  func.func @_fused_kernel(%arg0: memref<8x128xbf16, #tpu.memory_space<vmem>>, %arg1: memref<192x128xbf16, #tpu.memory_space<vmem>>, %arg2: memref<35x128xf32, #tpu.memory_space<vmem>>, %arg3: memref<3x2x128xf32, #tpu.memory_space<vmem>>) attributes {dimension_semantics = [], scalar_prefetch = 0 : i64, scratch_operands = 0 : i64, tpu.core_type = #tpu.core_type<tc>} {
    %c0 = arith.constant 0 : index
    %c0_0 = arith.constant 0 : index
    %0 = vector.load %arg1[%c0, %c0_0] : memref<192x128xbf16, #tpu.memory_space<vmem>>, vector<32x8xbf16>
    %c32 = arith.constant 32 : index
    %c0_1 = arith.constant 0 : index
    %1 = vector.load %arg1[%c32, %c0_1] : memref<192x128xbf16, #tpu.memory_space<vmem>>, vector<32x32xbf16>
    %c64 = arith.constant 64 : index
    %c0_2 = arith.constant 0 : index
    %2 = vector.load %arg1[%c64, %c0_2] : memref<192x128xbf16, #tpu.memory_space<vmem>>, vector<32x32xbf16>
    %c96 = arith.constant 96 : index
    %c0_3 = arith.constant 0 : index
    %3 = vector.load %arg1[%c96, %c0_3] : memref<192x128xbf16, #tpu.memory_space<vmem>>, vector<32x128xbf16>
    %c128 = arith.constant 128 : index
    %c0_4 = arith.constant 0 : index
    %4 = vector.load %arg1[%c128, %c0_4] : memref<192x128xbf16, #tpu.memory_space<vmem>>, vector<32x128xbf16>
    %c160 = arith.constant 160 : index
    %c0_5 = arith.constant 0 : index
    %5 = vector.load %arg1[%c160, %c0_5] : memref<192x128xbf16, #tpu.memory_space<vmem>>, vector<32x128xbf16>
    %c0_6 = arith.constant 0 : index
    %c0_7 = arith.constant 0 : index
    %6 = vector.load %arg2[%c0_6, %c0_7] : memref<35x128xf32, #tpu.memory_space<vmem>>, vector<32x1xf32>
    %c0_8 = arith.constant 0 : index
    %c1 = arith.constant 1 : index
    %7 = vector.load %arg2[%c0_8, %c1] : memref<35x128xf32, #tpu.memory_space<vmem>>, vector<32x1xf32>
    %c0_9 = arith.constant 0 : index
    %c2 = arith.constant 2 : index
    %8 = vector.load %arg2[%c0_9, %c2] : memref<35x128xf32, #tpu.memory_space<vmem>>, vector<32x1xf32>
    %c32_10 = arith.constant 32 : index
    %c0_11 = arith.constant 0 : index
    %9 = vector.load %arg2[%c32_10, %c0_11] : memref<35x128xf32, #tpu.memory_space<vmem>>, vector<1x128xf32>
    %c33 = arith.constant 33 : index
    %c0_12 = arith.constant 0 : index
    %10 = vector.load %arg2[%c33, %c0_12] : memref<35x128xf32, #tpu.memory_space<vmem>>, vector<1x128xf32>
    %c34 = arith.constant 34 : index
    %c0_13 = arith.constant 0 : index
    %11 = vector.load %arg2[%c34, %c0_13] : memref<35x128xf32, #tpu.memory_space<vmem>>, vector<1x128xf32>
    %c0_14 = arith.constant 0 : index
    %c0_15 = arith.constant 0 : index
    %12 = vector.load %arg0[%c0_14, %c0_15] : memref<8x128xbf16, #tpu.memory_space<vmem>>, vector<8x128xbf16>
    %cst = arith.constant dense<0.000000e+00> : vector<32x128xf32>
    %13 = tpu.matmul %0, %12, %cst {dimension_numbers = #tpu.dot_dimension_numbers<[1], [0], [0], [1], [0, 0, 1, 1], [], []>} : vector<32x8xbf16>, vector<8x128xbf16>, vector<32x128xf32> -> vector<32x128xf32>
    %14 = vector.broadcast %6 : vector<32x1xf32> to vector<32x128xf32>
    %15 = arith.addf %13, %14 : vector<32x128xf32>
    %cst_16 = arith.constant 0.000000e+00 : f32
    %16 = vector.broadcast %cst_16 : f32 to vector<32x128xf32>
    %17 = arith.maximumf %15, %16 : vector<32x128xf32>
    %18 = arith.truncf %17 : vector<32x128xf32> to vector<32x128xbf16>
    %cst_17 = arith.constant dense<0.000000e+00> : vector<32x128xf32>
    %19 = tpu.matmul %1, %18, %cst_17 {dimension_numbers = #tpu.dot_dimension_numbers<[1], [0], [0], [1], [0, 0, 1, 1], [], []>} : vector<32x32xbf16>, vector<32x128xbf16>, vector<32x128xf32> -> vector<32x128xf32>
    %20 = vector.broadcast %7 : vector<32x1xf32> to vector<32x128xf32>
    %21 = arith.addf %19, %20 : vector<32x128xf32>
    %cst_18 = arith.constant 0.000000e+00 : f32
    %22 = vector.broadcast %cst_18 : f32 to vector<32x128xf32>
    %23 = arith.maximumf %21, %22 : vector<32x128xf32>
    %24 = arith.truncf %23 : vector<32x128xf32> to vector<32x128xbf16>
    %cst_19 = arith.constant dense<0.000000e+00> : vector<32x128xf32>
    %25 = tpu.matmul %2, %24, %cst_19 {dimension_numbers = #tpu.dot_dimension_numbers<[1], [0], [0], [1], [0, 0, 1, 1], [], []>} : vector<32x32xbf16>, vector<32x128xbf16>, vector<32x128xf32> -> vector<32x128xf32>
    %26 = vector.broadcast %8 : vector<32x1xf32> to vector<32x128xf32>
    %27 = arith.addf %25, %26 : vector<32x128xf32>
    %cst_20 = arith.constant 0.000000e+00 : f32
    %28 = vector.broadcast %cst_20 : f32 to vector<32x128xf32>
    %29 = arith.maximumf %27, %28 : vector<32x128xf32>
    %30 = arith.truncf %29 : vector<32x128xf32> to vector<32x128xbf16>
    %31 = tpu.iota {dimensions = array<i32: 1>} : vector<2x128xi32>
    %32 = tpu.iota {dimensions = array<i32: 0>} : vector<2x128xi32>
    %c64_i32 = arith.constant 64 : i32
    %33 = vector.broadcast %c64_i32 : i32 to vector<2x128xi32>
    %34 = arith.muli %32, %33 : vector<2x128xi32>
    %35 = arith.cmpi sge, %31, %34 : vector<2x128xi32>
    %c64_i32_21 = arith.constant 64 : i32
    %36 = vector.broadcast %c64_i32_21 : i32 to vector<2x128xi32>
    %37 = arith.addi %34, %36 : vector<2x128xi32>
    %38 = arith.cmpi slt, %31, %37 : vector<2x128xi32>
    %39 = arith.andi %35, %38 : vector<2x128xi1>
    %cst_22 = arith.constant 1.000000e+00 : f32
    %cst_23 = arith.constant 0.000000e+00 : f32
    %40 = vector.broadcast %cst_22 : f32 to vector<2x128xf32>
    %41 = vector.broadcast %cst_23 : f32 to vector<2x128xf32>
    %42 = arith.select %39, %40, %41 : vector<2x128xi1>, vector<2x128xf32>
    %43 = arith.truncf %42 : vector<2x128xf32> to vector<2x128xbf16>
    %cst_24 = arith.constant dense<0.000000e+00> : vector<2x32xf32>
    %44 = tpu.matmul %43, %18, %cst_24 {dimension_numbers = #tpu.dot_dimension_numbers<[1], [1], [0], [0], [0, 0, 1, 0], [], []>} : vector<2x128xbf16>, vector<32x128xbf16>, vector<2x32xf32> -> vector<2x32xf32>
    %cst_25 = arith.constant 1.562500e-02 : f32
    %45 = vector.broadcast %cst_25 : f32 to vector<2x32xf32>
    %46 = arith.mulf %44, %45 : vector<2x32xf32>
    %cst_26 = arith.constant dense<0.000000e+00> : vector<2x32xf32>
    %47 = tpu.matmul %43, %24, %cst_26 {dimension_numbers = #tpu.dot_dimension_numbers<[1], [1], [0], [0], [0, 0, 1, 0], [], []>} : vector<2x128xbf16>, vector<32x128xbf16>, vector<2x32xf32> -> vector<2x32xf32>
    %cst_27 = arith.constant 1.562500e-02 : f32
    %48 = vector.broadcast %cst_27 : f32 to vector<2x32xf32>
    %49 = arith.mulf %47, %48 : vector<2x32xf32>
    %cst_28 = arith.constant dense<0.000000e+00> : vector<2x32xf32>
    %50 = tpu.matmul %43, %30, %cst_28 {dimension_numbers = #tpu.dot_dimension_numbers<[1], [1], [0], [0], [0, 0, 1, 0], [], []>} : vector<2x128xbf16>, vector<32x128xbf16>, vector<2x32xf32> -> vector<2x32xf32>
    %cst_29 = arith.constant 1.562500e-02 : f32
    %51 = vector.broadcast %cst_29 : f32 to vector<2x32xf32>
    %52 = arith.mulf %50, %51 : vector<2x32xf32>
    %53 = arith.truncf %46 : vector<2x32xf32> to vector<2x32xbf16>
    %cst_30 = arith.constant dense<0.000000e+00> : vector<2x128xf32>
    %54 = tpu.matmul %53, %3, %cst_30 {dimension_numbers = #tpu.dot_dimension_numbers<[1], [0], [0], [1], [0, 0, 1, 1], [], []>} : vector<2x32xbf16>, vector<32x128xbf16>, vector<2x128xf32> -> vector<2x128xf32>
    %55 = vector.broadcast %9 : vector<1x128xf32> to vector<2x128xf32>
    %56 = arith.addf %54, %55 : vector<2x128xf32>
    %57 = arith.truncf %49 : vector<2x32xf32> to vector<2x32xbf16>
    %cst_31 = arith.constant dense<0.000000e+00> : vector<2x128xf32>
    %58 = tpu.matmul %57, %4, %cst_31 {dimension_numbers = #tpu.dot_dimension_numbers<[1], [0], [0], [1], [0, 0, 1, 1], [], []>} : vector<2x32xbf16>, vector<32x128xbf16>, vector<2x128xf32> -> vector<2x128xf32>
    %59 = vector.broadcast %10 : vector<1x128xf32> to vector<2x128xf32>
    %60 = arith.addf %58, %59 : vector<2x128xf32>
    %61 = arith.truncf %52 : vector<2x32xf32> to vector<2x32xbf16>
    %cst_32 = arith.constant dense<0.000000e+00> : vector<2x128xf32>
    %62 = tpu.matmul %61, %5, %cst_32 {dimension_numbers = #tpu.dot_dimension_numbers<[1], [0], [0], [1], [0, 0, 1, 1], [], []>} : vector<2x32xbf16>, vector<32x128xbf16>, vector<2x128xf32> -> vector<2x128xf32>
    %63 = vector.broadcast %11 : vector<1x128xf32> to vector<2x128xf32>
    %64 = arith.addf %62, %63 : vector<2x128xf32>
    %c0_33 = arith.constant 0 : index
    %c0_34 = arith.constant 0 : index
    %c0_35 = arith.constant 0 : index
    %65 = vector.load %arg3[%c0_33, %c0_34, %c0_35] : memref<3x2x128xf32, #tpu.memory_space<vmem>>, vector<1x2x128xf32>
    %66 = vector.shape_cast %65 : vector<1x2x128xf32> to vector<2x128xf32>
    %67 = vector.shape_cast %56 : vector<2x128xf32> to vector<1x2x128xf32>
    tpu.vector_store %arg3[%c0_33, %c0_34, %c0_35], %67 {strides = array<i32>} : memref<3x2x128xf32, #tpu.memory_space<vmem>>, vector<1x2x128xf32>,
    %c1_36 = arith.constant 1 : index
    %c0_37 = arith.constant 0 : index
    %c0_38 = arith.constant 0 : index
    %68 = vector.load %arg3[%c1_36, %c0_37, %c0_38] : memref<3x2x128xf32, #tpu.memory_space<vmem>>, vector<1x2x128xf32>
    %69 = vector.shape_cast %68 : vector<1x2x128xf32> to vector<2x128xf32>
    %70 = vector.shape_cast %60 : vector<2x128xf32> to vector<1x2x128xf32>
    tpu.vector_store %arg3[%c1_36, %c0_37, %c0_38], %70 {strides = array<i32>} : memref<3x2x128xf32, #tpu.memory_space<vmem>>, vector<1x2x128xf32>,
    %c2_39 = arith.constant 2 : index
    %c0_40 = arith.constant 0 : index
    %c0_41 = arith.constant 0 : index
    %71 = vector.load %arg3[%c2_39, %c0_40, %c0_41] : memref<3x2x128xf32, #tpu.memory_space<vmem>>, vector<1x2x128xf32>
    %72 = vector.shape_cast %71 : vector<1x2x128xf32> to vector<2x128xf32>
    %73 = vector.shape_cast %64 : vector<2x128xf32> to vector<1x2x128xf32>
    tpu.vector_store %arg3[%c2_39, %c0_40, %c0_41], %73 {strides = array<i32>} : memref<3x2x128xf32, #tpu.memory_space<vmem>>, vector<1x2x128xf32>,
    return
  }
}

</mosaic_0001>

<llo_original>
// kernel: _forward_all.1
$region0: #{_forward_all.1}
  #allocation0 [shape = 'u32[]', space=smem, size = 0x4, offset = 0x4, fixed_abs, tag = 'smem constant byte address 0x4 - core index']
  #allocation1 [shape = 'u32[144,128]{1,0:T(1,128)}', space=vmem, size = 0x12000, scoped, tag = 'internal scratch']
  %s0 = inlined_call_operand.vmem [shape: bf16[8,128], index: 0, kind: input, shape index: {}]
  %s1 = inlined_call_operand.vmem [shape: bf16[192,128], index: 1, kind: input, shape index: {}]
  %s2 = inlined_call_operand.vmem [shape: f32[35,128], index: 2, kind: input, shape index: {}]
  %s3 = inlined_call_operand.hbm [shape: f32[3,2,128], index: 3, kind: output, shape index: {}]
  %s4 = sld [smem:[#allocation0]]
  $region22: #{_forward_all.1} parent=0
    _
  %s6 = ssub.s32 1, %s4
  %s7 = scalar_select 0, %s6, %s4
  $region1: #{_forward_all.1} parent=0
    #allocation2 [shape = 'u8[3072]{0}', space=vmem, size = 0xc00, scoped, tag = 'output window, operand 0, single buffered']
    #allocation3 [shape = 's32[1]{0}', space=sflag, size = 0x4, scoped, tag = 'scoped memory for _forward_all.1']
    %8 = vsyncpa [#allocation3], 0
    // Predicated region
    $region2: #{_forward_all.1} parent=1 // pred_check
      _
    $region3: #{_forward_all.1} parent=1 // pred_check_branch
      %10 = sbr.rel (0) target = $region5
    $region4: #{_forward_all.1} parent=1 // pred_region
      _
    $region5: #{_forward_all.1} parent=1 // pred_fallthru
      _
    // Predicated region
    $region6: #{_forward_all.1} parent=1 // pred_check
      _
    $region7: #{_forward_all.1} parent=1 // pred_check_branch
      %12 = sbr.rel (0) target = $region9
    $region8: #{_forward_all.1} parent=1 // pred_region
      _
    $region9: #{_forward_all.1} parent=1 // pred_fallthru
      _
    // Predicated region
    $region10: #{_forward_all.1} parent=1 // pred_check
      _
    $region11: #{_forward_all.1} parent=1 // pred_check_branch
      %14 = sbr.rel (0) target = $region13
    $region12: #{_forward_all.1} parent=1 // pred_region
      _
    $region13: #{_forward_all.1} parent=1 // pred_fallthru
      _
    %v16 = vld [vmem:[%s1] sm:$0xf]
    %v17 = vld [vmem:[%s1 + $0x4] sm:$0xf]
    %v18 = vld [vmem:[%s1 + $0x8] sm:$0xf]
    %v19 = vld [vmem:[%s1 + $0xc] sm:$0xf]
    %v20 = vld [vmem:[%s1 + $0x10] sm:$0xf]
    %v21 = vld [vmem:[%s1 + $0x14] sm:$0xf]
    %v22 = vld [vmem:[%s1 + $0x18] sm:$0xf]
    %v23 = vld [vmem:[%s1 + $0x1c] sm:$0xf]
    %v24 = vld [vmem:[%s1 + $0x20] sm:$0xf]
    %v25 = vld [vmem:[%s1 + $0x24] sm:$0xf]
    %v26 = vld [vmem:[%s1 + $0x28] sm:$0xf]
    %v27 = vld [vmem:[%s1 + $0x2c] sm:$0xf]
    %v28 = vld [vmem:[%s1 + $0x30] sm:$0xf]
    %v29 = vld [vmem:[%s1 + $0x34] sm:$0xf]
    %v30 = vld [vmem:[%s1 + $0x38] sm:$0xf]
    %v31 = vld [vmem:[%s1 + $0x3c] sm:$0xf]
    %v32 = vld [vmem:[%s1 + $0x40] sm:$0xf]
    %v33 = vld [vmem:[%s1 + $0x44] sm:$0xf]
    %v34 = vld [vmem:[%s1 + $0x48] sm:$0xf]
    %v35 = vld [vmem:[%s1 + $0x4c] sm:$0xf]
    %v36 = vld [vmem:[%s1 + $0x50] sm:$0xf]
    %v37 = vld [vmem:[%s1 + $0x54] sm:$0xf]
    %v38 = vld [vmem:[%s1 + $0x58] sm:$0xf]
    %v39 = vld [vmem:[%s1 + $0x5c] sm:$0xf]
    %v40 = vld [vmem:[%s2] sm:$0xff]
    %v41 = vld [vmem:[%s2 + $0x8] sm:$0xff]
    %v42 = vld [vmem:[%s2 + $0x10] sm:$0xff]
    %v43 = vld [vmem:[%s2 + $0x18] sm:$0xff]
    %v44 = vld [vmem:[%s2 + $0x20] sm:$0x1]
    %v45 = vld [vmem:[%s2 + $0x21] sm:$0x1]
    %v46 = vld [vmem:[%s2 + $0x22] sm:$0x1]
    %v47 = vld [vmem:[%s0] sm:$0xf]
    %49 = vset.pattern.permute.xlu0 0
    %50 = vperm.xlu0 %49, %v40
    %v51 = vpop.permute.xlu0 %50
    %54 = vset.pattern.permute.xlu0 0
    %55 = vperm.xlu0 %54, %v41
    %v56 = vpop.permute.xlu0 %55
    %59 = vset.pattern.permute.xlu0 0
    %60 = vperm.xlu0 %59, %v42
    %v61 = vpop.permute.xlu0 %60
    %64 = vset.pattern.permute.xlu0 0
    %65 = vperm.xlu0 %64, %v43
    %v66 = vpop.permute.xlu0 %65
    %v72 = vunpack.c.l.b16 %v16
    %v73 = vunpack.c.l.b16 %v17
    %v74 = vunpack.c.l.b16 %v18
    %v75 = vunpack.c.l.b16 %v19
    %v76 = vpack.c.b16 %v73, %v72
    %v77 = vpack.c.b16 %v75, %v74
    %vm78 = vcmask 64512
    %v80 = vsel %vm78, %v76, 0
    %v83 = vsel %vm78, %v77, 0
    %vm85 = vcmask 1043456
    %v87 = vsel %vm85, %v47, 0
    %89 = vmatprep.subr.bf16.mxu0 0
    %90 = vmatpush1.bf16.msra.mxu0 0
    %91 = vmatprep.subr.bf16.mxu0 0
    %92 = vmatpush1.bf16.msra.mxu0 0
    %93 = vmatprep.subr.bf16.mxu0 0
    %94 = vmatpush1.bf16.msra.mxu0 0
    %95 = vmatprep.subr.bf16.mxu0 0
    %96 = vmatpush1.bf16.msra.mxu0 0
    %97 = vmatprep.subr.bf16.mxu0 0
    %98 = vmatpush1.bf16.msra.mxu0 0
    %99 = vmatprep.subr.bf16.mxu0 0
    %100 = vmatpush1.bf16.msra.mxu0 0
    %101 = vmatprep.subr.bf16.mxu0 0
    %102 = vmatpush1.bf16.msra.mxu0 0
    %103 = vmatprep.subr.bf16.mxu0 0
    %104 = vmatpush1.bf16.msra.mxu0 %v87
    %105 = vmatprep.subr.bf16.mxu0 0
    %106 = vmatpush2.bf16.msra.mxu0 0
    %107 = vmatprep.subr.bf16.mxu0 0
    %108 = vmatpush2.bf16.msra.mxu0 0
    %109 = vmatprep.subr.bf16.mxu0 0
    %110 = vmatpush2.bf16.msra.mxu0 0
    %111 = vmatprep.subr.bf16.mxu0 0
    %112 = vmatpush2.bf16.msra.mxu0 0
    %113 = vmatprep.subr.bf16.mxu0 0
    %114 = vmatpush2.bf16.msra.mxu0 0
    %115 = vmatprep.subr.bf16.mxu0 0
    %116 = vmatpush2.bf16.msra.mxu0 0
    %117 = vmatprep.subr.bf16.mxu0 0
    %118 = vmatpush2.bf16.msra.mxu0 0
    %119 = vmatprep.subr.bf16.mxu0 0
    %120 = vmatpush2.bf16.msra.mxu0 0
    %121 = vmatprep.mubr.bf16.mxu0 0
    %122 = vmatmul.mubr.bf16.gmra.mxu0 %v80
    %v123 = vpop.f32.mrf.mxu0
    %v124 = vadd.f32 %v51, %v123
    %v125 = vpop.f32.mrf.mxu0
    %v126 = vpop.f32.mrf.mxu0
    %v127 = vadd.f32 %v56, %v126
    %v128 = vpop.f32.mrf.mxu0
    %129 = vmatprep.mubr.bf16.mxu0 0
    %130 = vmatmul.mubr.bf16.gmra.mxu0 %v83
    %v131 = vpop.f32.mrf.mxu0
    %v132 = vadd.f32 %v61, %v131
    %v133 = vpop.f32.mrf.mxu0
    %v134 = vpop.f32.mrf.mxu0
    %v135 = vadd.f32 %v66, %v134
    %v136 = vpop.f32.mrf.mxu0
    %137 = vdwg.mxu0
    %v138 = vmax.f32 %v124, 0.0
    %v139 = vmax.f32 %v127, 0.0
    %v140 = vmax.f32 %v132, 0.0
    %v141 = vmax.f32 %v135, 0.0
    %v142 = vpack.c.bf16 %v139, %v138
    %v143 = vpack.c.bf16 %v141, %v140
    %144 = vset.pattern.permute.xlu0 1
    %145 = vperm.xlu0 %144, %v40
    %v146 = vpop.permute.xlu0 %145
    %148 = vset.pattern.permute.xlu0 1
    %149 = vperm.xlu0 %148, %v41
    %v150 = vpop.permute.xlu0 %149
    %152 = vset.pattern.permute.xlu0 1
    %153 = vperm.xlu0 %152, %v42
    %v154 = vpop.permute.xlu0 %153
    %156 = vset.pattern.permute.xlu0 1
    %157 = vperm.xlu0 %156, %v43
    %v158 = vpop.permute.xlu0 %157
    %v164 = vunpack.c.l.b16 %v20
    %v165 = vunpack.c.l.b16 %v21
    %v166 = vunpack.c.l.b16 %v22
    %v167 = vunpack.c.l.b16 %v23
    %v168 = vpack.c.b16 %v165, %v164
    %v169 = vpack.c.b16 %v167, %v166
    %vm170 = vcmask 261120
    %v172 = vsel %vm170, %v168, 0
    %v175 = vsel %vm170, %v169, 0
    %177 = vmatprep.subr.bf16.mxu0 0
    %178 = vmatpush1.bf16.msra.mxu0 0
    %179 = vmatprep.subr.bf16.mxu0 0
    %180 = vmatpush1.bf16.msra.mxu0 0
    %181 = vmatprep.subr.bf16.mxu0 0
    %182 = vmatpush1.bf16.msra.mxu0 0
    %183 = vmatprep.subr.bf16.mxu0 0
    %184 = vmatpush1.bf16.msra.mxu0 0
    %185 = vmatprep.subr.bf16.mxu0 0
    %186 = vmatpush1.bf16.msra.mxu0 0
    %187 = vmatprep.subr.bf16.mxu0 0
    %188 = vmatpush1.bf16.msra.mxu0 0
    %189 = vmatprep.subr.bf16.mxu0 0
    %190 = vmatpush1.bf16.msra.mxu0 %v143
    %191 = vmatprep.subr.bf16.mxu0 0
    %192 = vmatpush1.bf16.msra.mxu0 %v142
    %193 = vmatprep.subr.bf16.mxu0 0
    %194 = vmatpush2.bf16.msra.mxu0 0
    %195 = vmatprep.subr.bf16.mxu0 0
    %196 = vmatpush2.bf16.msra.mxu0 0
    %197 = vmatprep.subr.bf16.mxu0 0
    %198 = vmatpush2.bf16.msra.mxu0 0
    %199 = vmatprep.subr.bf16.mxu0 0
    %200 = vmatpush2.bf16.msra.mxu0 0
    %201 = vmatprep.subr.bf16.mxu0 0
    %202 = vmatpush2.bf16.msra.mxu0 0
    %203 = vmatprep.subr.bf16.mxu0 0
    %204 = vmatpush2.bf16.msra.mxu0 0
    %205 = vmatprep.subr.bf16.mxu0 0
    %206 = vmatpush2.bf16.msra.mxu0 0
    %207 = vmatprep.subr.bf16.mxu0 0
    %208 = vmatpush2.bf16.msra.mxu0 0
    %209 = vmatprep.mubr.bf16.mxu0 0
    %210 = vmatmul.mubr.bf16.gmra.mxu0 %v172
    %v211 = vpop.f32.mrf.mxu0
    %v212 = vadd.f32 %v146, %v211
    %v213 = vpop.f32.mrf.mxu0
    %v214 = vpop.f32.mrf.mxu0
    %v215 = vadd.f32 %v150, %v214
    %v216 = vpop.f32.mrf.mxu0
    %217 = vmatprep.mubr.bf16.mxu0 0
    %218 = vmatmul.mubr.bf16.gmra.mxu0 %v175
    %v219 = vpop.f32.mrf.mxu0
    %v220 = vadd.f32 %v154, %v219
    %v221 = vpop.f32.mrf.mxu0
    %v222 = vpop.f32.mrf.mxu0
    %v223 = vadd.f32 %v158, %v222
    %v224 = vpop.f32.mrf.mxu0
    %225 = vdwg.mxu0
    %v226 = vmax.f32 %v212, 0.0
    %v227 = vmax.f32 %v215, 0.0
    %v228 = vmax.f32 %v220, 0.0
    %v229 = vmax.f32 %v223, 0.0
    %v230 = vpack.c.bf16 %v227, %v226
    %v231 = vpack.c.bf16 %v229, %v228
    %232 = vset.pattern.permute.xlu0 2
    %233 = vperm.xlu0 %232, %v40
    %v234 = vpop.permute.xlu0 %233
    %236 = vset.pattern.permute.xlu0 2
    %237 = vperm.xlu0 %236, %v41
    %v238 = vpop.permute.xlu0 %237
    %240 = vset.pattern.permute.xlu0 2
    %241 = vperm.xlu0 %240, %v42
    %v242 = vpop.permute.xlu0 %241
    %244 = vset.pattern.permute.xlu0 2
    %245 = vperm.xlu0 %244, %v43
    %v246 = vpop.permute.xlu0 %245
    %v252 = vunpack.c.l.b16 %v24
    %v253 = vunpack.c.l.b16 %v25
    %v254 = vunpack.c.l.b16 %v26
    %v255 = vunpack.c.l.b16 %v27
    %v256 = vpack.c.b16 %v253, %v252
    %v257 = vpack.c.b16 %v255, %v254
    %v259 = vsel %vm170, %v256, 0
    %v262 = vsel %vm170, %v257, 0
    %264 = vmatprep.subr.bf16.mxu0 0
    %265 = vmatpush1.bf16.msra.mxu0 0
    %266 = vmatprep.subr.bf16.mxu0 0
    %267 = vmatpush1.bf16.msra.mxu0 0
    %268 = vmatprep.subr.bf16.mxu0 0
    %269 = vmatpush1.bf16.msra.mxu0 0
    %270 = vmatprep.subr.bf16.mxu0 0
    %271 = vmatpush1.bf16.msra.mxu0 0
    %272 = vmatprep.subr.bf16.mxu0 0
    %273 = vmatpush1.bf16.msra.mxu0 0
    %274 = vmatprep.subr.bf16.mxu0 0
    %275 = vmatpush1.bf16.msra.mxu0 0
    %276 = vmatprep.subr.bf16.mxu0 0
    %277 = vmatpush1.bf16.msra.mxu0 %v231
    %278 = vmatprep.subr.bf16.mxu0 0
    %279 = vmatpush1.bf16.msra.mxu0 %v230
    %280 = vmatprep.subr.bf16.mxu0 0
    %281 = vmatpush2.bf16.msra.mxu0 0
    %282 = vmatprep.subr.bf16.mxu0 0
    %283 = vmatpush2.bf16.msra.mxu0 0
    %284 = vmatprep.subr.bf16.mxu0 0
    %285 = vmatpush2.bf16.msra.mxu0 0
    %286 = vmatprep.subr.bf16.mxu0 0
    %287 = vmatpush2.bf16.msra.mxu0 0
    %288 = vmatprep.subr.bf16.mxu0 0
    %289 = vmatpush2.bf16.msra.mxu0 0
    %290 = vmatprep.subr.bf16.mxu0 0
    %291 = vmatpush2.bf16.msra.mxu0 0
    %292 = vmatprep.subr.bf16.mxu0 0
    %293 = vmatpush2.bf16.msra.mxu0 0
    %294 = vmatprep.subr.bf16.mxu0 0
    %295 = vmatpush2.bf16.msra.mxu0 0
    %296 = vmatprep.mubr.bf16.mxu0 0
    %297 = vmatmul.mubr.bf16.gmra.mxu0 %v259
    %v298 = vpop.f32.mrf.mxu0
    %v299 = vadd.f32 %v234, %v298
    %v300 = vpop.f32.mrf.mxu0
    %v301 = vpop.f32.mrf.mxu0
    %v302 = vadd.f32 %v238, %v301
    %v303 = vpop.f32.mrf.mxu0
    %304 = vmatprep.mubr.bf16.mxu0 0
    %305 = vmatmul.mubr.bf16.gmra.mxu0 %v262
    %v306 = vpop.f32.mrf.mxu0
    %v307 = vadd.f32 %v242, %v306
    %v308 = vpop.f32.mrf.mxu0
    %v309 = vpop.f32.mrf.mxu0
    %v310 = vadd.f32 %v246, %v309
    %v311 = vpop.f32.mrf.mxu0
    %312 = vdwg.mxu0
    %v313 = vmax.f32 %v299, 0.0
    %v314 = vmax.f32 %v302, 0.0
    %v315 = vmax.f32 %v307, 0.0
    %v316 = vmax.f32 %v310, 0.0
    %v317 = vpack.c.bf16 %v314, %v313
    %v318 = vpack.c.bf16 %v316, %v315
    %v319 = vlaneseq
    %v320 = vand.u32 %v319, 127
    %v321 = vlaneseq
    %v322 = vshrl.u32 %v321, 7
    %v323 = vmul.u32 %v322, 64
    %vm324 = vcmp.ge.s32.totalorder %v320, %v323
    %v325 = vadd.s32 %v323, 64
    %vm326 = vcmp.lt.s32.totalorder %v320, %v325
    %vm327 = vmand %vm324, %vm326
    %v328 = vsel %vm327, 1.0, 0.0
    %v329 = vpack.c.bf16 %v328, %v328
    %330 = vmatprep.subr.bf16.mxu0 0
    %331 = vmatpush1.bf16.xpose.msra.mxu0 0
    %332 = vmatprep.subr.bf16.mxu0 0
    %333 = vmatpush1.bf16.xpose.msra.mxu0 0
    %334 = vmatprep.subr.bf16.mxu0 0
    %335 = vmatpush1.bf16.xpose.msra.mxu0 0
    %336 = vmatprep.subr.bf16.mxu0 0
    %337 = vmatpush1.bf16.xpose.msra.mxu0 0
    %338 = vmatprep.subr.bf16.mxu0 0
    %339 = vmatpush1.bf16.xpose.msra.mxu0 0
    %340 = vmatprep.subr.bf16.mxu0 0
    %341 = vmatpush1.bf16.xpose.msra.mxu0 0
    %342 = vmatprep.subr.bf16.mxu0 0
    %343 = vmatpush1.bf16.xpose.msra.mxu0 %v143
    %344 = vmatprep.subr.bf16.mxu0 0
    %345 = vmatpush1.bf16.xpose.msra.mxu0 %v142
    %346 = vmatprep.subr.bf16.mxu0 0
    %347 = vmatpush2.bf16.xpose.msra.mxu0 0
    %348 = vmatprep.subr.bf16.mxu0 0
    %349 = vmatpush2.bf16.xpose.msra.mxu0 0
    %350 = vmatprep.subr.bf16.mxu0 0
    %351 = vmatpush2.bf16.xpose.msra.mxu0 0
    %352 = vmatprep.subr.bf16.mxu0 0
    %353 = vmatpush2.bf16.xpose.msra.mxu0 0
    %354 = vmatprep.subr.bf16.mxu0 0
    %355 = vmatpush2.bf16.xpose.msra.mxu0 0
    %356 = vmatprep.subr.bf16.mxu0 0
    %357 = vmatpush2.bf16.xpose.msra.mxu0 0
    %358 = vmatprep.subr.bf16.mxu0 0
    %359 = vmatpush2.bf16.xpose.msra.mxu0 0
    %360 = vmatprep.subr.bf16.mxu0 0
    %361 = vmatpush2.bf16.xpose.msra.mxu0 0
    %362 = vmatprep.mubr.bf16.mxu0 0
    %363 = vmatmul.mubr.bf16.gmra.mxu0 %v329
    %v364 = vpop.f32.mrf.mxu0
    %v365 = vadd.f32 0.0, %v364
    %v366 = vpop.f32.mrf.mxu0
    %v367 = vpop.f32.mrf.mxu0
    %v368 = vpop.f32.mrf.mxu0
    %369 = vdwg.mxu0
    %v370 = vmul.f32 %v365, 0.015625
    %371 = vmatprep.subr.bf16.mxu0 0
    %372 = vmatpush1.bf16.xpose.msra.mxu0 0
    %373 = vmatprep.subr.bf16.mxu0 0
    %374 = vmatpush1.bf16.xpose.msra.mxu0 0
    %375 = vmatprep.subr.bf16.mxu0 0
    %376 = vmatpush1.bf16.xpose.msra.mxu0 0
    %377 = vmatprep.subr.bf16.mxu0 0
    %378 = vmatpush1.bf16.xpose.msra.mxu0 0
    %379 = vmatprep.subr.bf16.mxu0 0
    %380 = vmatpush1.bf16.xpose.msra.mxu0 0
    %381 = vmatprep.subr.bf16.mxu0 0
    %382 = vmatpush1.bf16.xpose.msra.mxu0 0
    %383 = vmatprep.subr.bf16.mxu0 0
    %384 = vmatpush1.bf16.xpose.msra.mxu0 %v231
    %385 = vmatprep.subr.bf16.mxu0 0
    %386 = vmatpush1.bf16.xpose.msra.mxu0 %v230
    %387 = vmatprep.subr.bf16.mxu0 0
    %388 = vmatpush2.bf16.xpose.msra.mxu0 0
    %389 = vmatprep.subr.bf16.mxu0 0
    %390 = vmatpush2.bf16.xpose.msra.mxu0 0
    %391 = vmatprep.subr.bf16.mxu0 0
    %392 = vmatpush2.bf16.xpose.msra.mxu0 0
    %393 = vmatprep.subr.bf16.mxu0 0
    %394 = vmatpush2.bf16.xpose.msra.mxu0 0
    %395 = vmatprep.subr.bf16.mxu0 0
    %396 = vmatpush2.bf16.xpose.msra.mxu0 0
    %397 = vmatprep.subr.bf16.mxu0 0
    %398 = vmatpush2.bf16.xpose.msra.mxu0 0
    %399 = vmatprep.subr.bf16.mxu0 0
    %400 = vmatpush2.bf16.xpose.msra.mxu0 0
    %401 = vmatprep.subr.bf16.mxu0 0
    %402 = vmatpush2.bf16.xpose.msra.mxu0 0
    %403 = vmatprep.mubr.bf16.mxu0 0
    %404 = vmatmul.mubr.bf16.gmra.mxu0 %v329
    %v405 = vpop.f32.mrf.mxu0
    %v406 = vadd.f32 0.0, %v405
    %v407 = vpop.f32.mrf.mxu0
    %v408 = vpop.f32.mrf.mxu0
    %v409 = vpop.f32.mrf.mxu0
    %410 = vdwg.mxu0
    %v411 = vmul.f32 %v406, 0.015625
    %412 = vmatprep.subr.bf16.mxu0 0
    %413 = vmatpush1.bf16.xpose.msra.mxu0 0
    %414 = vmatprep.subr.bf16.mxu0 0
    %415 = vmatpush1.bf16.xpose.msra.mxu0 0
    %416 = vmatprep.subr.bf16.mxu0 0
    %417 = vmatpush1.bf16.xpose.msra.mxu0 0
    %418 = vmatprep.subr.bf16.mxu0 0
    %419 = vmatpush1.bf16.xpose.msra.mxu0 0
    %420 = vmatprep.subr.bf16.mxu0 0
    %421 = vmatpush1.bf16.xpose.msra.mxu0 0
    %422 = vmatprep.subr.bf16.mxu0 0
    %423 = vmatpush1.bf16.xpose.msra.mxu0 0
    %424 = vmatprep.subr.bf16.mxu0 0
    %425 = vmatpush1.bf16.xpose.msra.mxu0 %v318
    %426 = vmatprep.subr.bf16.mxu0 0
    %427 = vmatpush1.bf16.xpose.msra.mxu0 %v317
    %428 = vmatprep.subr.bf16.mxu0 0
    %429 = vmatpush2.bf16.xpose.msra.mxu0 0
    %430 = vmatprep.subr.bf16.mxu0 0
    %431 = vmatpush2.bf16.xpose.msra.mxu0 0
    %432 = vmatprep.subr.bf16.mxu0 0
    %433 = vmatpush2.bf16.xpose.msra.mxu0 0
    %434 = vmatprep.subr.bf16.mxu0 0
    %435 = vmatpush2.bf16.xpose.msra.mxu0 0
    %436 = vmatprep.subr.bf16.mxu0 0
    %437 = vmatpush2.bf16.xpose.msra.mxu0 0
    %438 = vmatprep.subr.bf16.mxu0 0
    %439 = vmatpush2.bf16.xpose.msra.mxu0 0
    %440 = vmatprep.subr.bf16.mxu0 0
    %441 = vmatpush2.bf16.xpose.msra.mxu0 0
    %442 = vmatprep.subr.bf16.mxu0 0
    %443 = vmatpush2.bf16.xpose.msra.mxu0 0
    %444 = vmatprep.mubr.bf16.mxu0 0
    %445 = vmatmul.mubr.bf16.gmra.mxu0 %v329
    %v446 = vpop.f32.mrf.mxu0
    %v447 = vadd.f32 0.0, %v446
    %v448 = vpop.f32.mrf.mxu0
    %v449 = vpop.f32.mrf.mxu0
    %v450 = vpop.f32.mrf.mxu0
    %451 = vdwg.mxu0
    %v452 = vmul.f32 %v447, 0.015625
    %v453 = vpack.c.bf16 %v370, %v370
    %v454 = vlaneseq
    %v455 = vshrl.u32 %v454, 7
    %v456 = vsub.s32 0, %v455
    %v457 = vrot.slane %v44, %v456
    %v462 = vunpack.c.l.b16 %v28
    %v463 = vunpack.c.l.b16 %v29
    %v464 = vunpack.c.l.b16 %v30
    %v465 = vunpack.c.l.b16 %v31
    %v466 = vpack.c.b16 %v463, %v462
    %v467 = vpack.c.b16 %v465, %v464
    %v471 = vsel %vm170, %v453, 0
    %473 = vmatprep.subr.bf16.mxu0 0
    %474 = vmatpush1.bf16.msra.mxu0 0
    %475 = vmatprep.subr.bf16.mxu0 0
    %476 = vmatpush1.bf16.msra.mxu0 0
    %477 = vmatprep.subr.bf16.mxu0 0
    %478 = vmatpush1.bf16.msra.mxu0 0
    %479 = vmatprep.subr.bf16.mxu0 0
    %480 = vmatpush1.bf16.msra.mxu0 0
    %481 = vmatprep.subr.bf16.mxu0 0
    %482 = vmatpush1.bf16.msra.mxu0 0
    %483 = vmatprep.subr.bf16.mxu0 0
    %484 = vmatpush1.bf16.msra.mxu0 0
    %485 = vmatprep.subr.bf16.mxu0 0
    %486 = vmatpush1.bf16.msra.mxu0 %v467
    %487 = vmatprep.subr.bf16.mxu0 0
    %488 = vmatpush1.bf16.msra.mxu0 %v466
    %489 = vmatprep.subr.bf16.mxu0 0
    %490 = vmatpush2.bf16.msra.mxu0 0
    %491 = vmatprep.subr.bf16.mxu0 0
    %492 = vmatpush2.bf16.msra.mxu0 0
    %493 = vmatprep.subr.bf16.mxu0 0
    %494 = vmatpush2.bf16.msra.mxu0 0
    %495 = vmatprep.subr.bf16.mxu0 0
    %496 = vmatpush2.bf16.msra.mxu0 0
    %497 = vmatprep.subr.bf16.mxu0 0
    %498 = vmatpush2.bf16.msra.mxu0 0
    %499 = vmatprep.subr.bf16.mxu0 0
    %500 = vmatpush2.bf16.msra.mxu0 0
    %501 = vmatprep.subr.bf16.mxu0 0
    %502 = vmatpush2.bf16.msra.mxu0 0
    %503 = vmatprep.subr.bf16.mxu0 0
    %504 = vmatpush2.bf16.msra.mxu0 0
    %505 = vmatprep.mubr.bf16.mxu0 0
    %506 = vmatmul.mubr.bf16.gmra.mxu0 %v471
    %v507 = vpop.f32.mrf.mxu0
    %v508 = vadd.f32 %v457, %v507
    %v509 = vpop.f32.mrf.mxu0
    %v510 = vpop.f32.mrf.mxu0
    %v511 = vpop.f32.mrf.mxu0
    %512 = vdwg.mxu0
    %v513 = vpack.c.bf16 %v411, %v411
    %v514 = vlaneseq
    %v515 = vshrl.u32 %v514, 7
    %v516 = vsub.s32 0, %v515
    %v517 = vrot.slane %v45, %v516
    %v522 = vunpack.c.l.b16 %v32
    %v523 = vunpack.c.l.b16 %v33
    %v524 = vunpack.c.l.b16 %v34
    %v525 = vunpack.c.l.b16 %v35
    %v526 = vpack.c.b16 %v523, %v522
    %v527 = vpack.c.b16 %v525, %v524
    %v531 = vsel %vm170, %v513, 0
    %533 = vmatprep.subr.bf16.mxu0 0
    %534 = vmatpush1.bf16.msra.mxu0 0
    %535 = vmatprep.subr.bf16.mxu0 0
    %536 = vmatpush1.bf16.msra.mxu0 0
    %537 = vmatprep.subr.bf16.mxu0 0
    %538 = vmatpush1.bf16.msra.mxu0 0
    %539 = vmatprep.subr.bf16.mxu0 0
    %540 = vmatpush1.bf16.msra.mxu0 0
    %541 = vmatprep.subr.bf16.mxu0 0
    %542 = vmatpush1.bf16.msra.mxu0 0
    %543 = vmatprep.subr.bf16.mxu0 0
    %544 = vmatpush1.bf16.msra.mxu0 0
    %545 = vmatprep.subr.bf16.mxu0 0
    %546 = vmatpush1.bf16.msra.mxu0 %v527
    %547 = vmatprep.subr.bf16.mxu0 0
    %548 = vmatpush1.bf16.msra.mxu0 %v526
    %549 = vmatprep.subr.bf16.mxu0 0
    %550 = vmatpush2.bf16.msra.mxu0 0
    %551 = vmatprep.subr.bf16.mxu0 0
    %552 = vmatpush2.bf16.msra.mxu0 0
    %553 = vmatprep.subr.bf16.mxu0 0
    %554 = vmatpush2.bf16.msra.mxu0 0
    %555 = vmatprep.subr.bf16.mxu0 0
    %556 = vmatpush2.bf16.msra.mxu0 0
    %557 = vmatprep.subr.bf16.mxu0 0
    %558 = vmatpush2.bf16.msra.mxu0 0
    %559 = vmatprep.subr.bf16.mxu0 0
    %560 = vmatpush2.bf16.msra.mxu0 0
    %561 = vmatprep.subr.bf16.mxu0 0
    %562 = vmatpush2.bf16.msra.mxu0 0
    %563 = vmatprep.subr.bf16.mxu0 0
    %564 = vmatpush2.bf16.msra.mxu0 0
    %565 = vmatprep.mubr.bf16.mxu0 0
    %566 = vmatmul.mubr.bf16.gmra.mxu0 %v531
    %v567 = vpop.f32.mrf.mxu0
    %v568 = vadd.f32 %v517, %v567
    %v569 = vpop.f32.mrf.mxu0
    %v570 = vpop.f32.mrf.mxu0
    %v571 = vpop.f32.mrf.mxu0
    %572 = vdwg.mxu0
    %v573 = vpack.c.bf16 %v452, %v452
    %v574 = vlaneseq
    %v575 = vshrl.u32 %v574, 7
    %v576 = vsub.s32 0, %v575
    %v577 = vrot.slane %v46, %v576
    %v582 = vunpack.c.l.b16 %v36
    %v583 = vunpack.c.l.b16 %v37
    %v584 = vunpack.c.l.b16 %v38
    %v585 = vunpack.c.l.b16 %v39
    %v586 = vpack.c.b16 %v583, %v582
    %v587 = vpack.c.b16 %v585, %v584
    %v591 = vsel %vm170, %v573, 0
    %593 = vmatprep.subr.bf16.mxu0 0
    %594 = vmatpush1.bf16.msra.mxu0 0
    %595 = vmatprep.subr.bf16.mxu0 0
    %596 = vmatpush1.bf16.msra.mxu0 0
    %597 = vmatprep.subr.bf16.mxu0 0
    %598 = vmatpush1.bf16.msra.mxu0 0
    %599 = vmatprep.subr.bf16.mxu0 0
    %600 = vmatpush1.bf16.msra.mxu0 0
    %601 = vmatprep.subr.bf16.mxu0 0
    %602 = vmatpush1.bf16.msra.mxu0 0
    %603 = vmatprep.subr.bf16.mxu0 0
    %604 = vmatpush1.bf16.msra.mxu0 0
    %605 = vmatprep.subr.bf16.mxu0 0
    %606 = vmatpush1.bf16.msra.mxu0 %v587
    %607 = vmatprep.subr.bf16.mxu0 0
    %608 = vmatpush1.bf16.msra.mxu0 %v586
    %609 = vmatprep.subr.bf16.mxu0 0
    %610 = vmatpush2.bf16.msra.mxu0 0
    %611 = vmatprep.subr.bf16.mxu0 0
    %612 = vmatpush2.bf16.msra.mxu0 0
    %613 = vmatprep.subr.bf16.mxu0 0
    %614 = vmatpush2.bf16.msra.mxu0 0
    %615 = vmatprep.subr.bf16.mxu0 0
    %616 = vmatpush2.bf16.msra.mxu0 0
    %617 = vmatprep.subr.bf16.mxu0 0
    %618 = vmatpush2.bf16.msra.mxu0 0
    %619 = vmatprep.subr.bf16.mxu0 0
    %620 = vmatpush2.bf16.msra.mxu0 0
    %621 = vmatprep.subr.bf16.mxu0 0
    %622 = vmatpush2.bf16.msra.mxu0 0
    %623 = vmatprep.subr.bf16.mxu0 0
    %624 = vmatpush2.bf16.msra.mxu0 0
    %625 = vmatprep.mubr.bf16.mxu0 0
    %626 = vmatmul.mubr.bf16.gmra.mxu0 %v591
    %v627 = vpop.f32.mrf.mxu0
    %v628 = vadd.f32 %v577, %v627
    %v629 = vpop.f32.mrf.mxu0
    %v630 = vpop.f32.mrf.mxu0
    %v631 = vpop.f32.mrf.mxu0
    %632 = vdwg.mxu0
    %633 = vst [vmem:[#allocation2] sm:$0x3] %v508
    %s634 = scalar_lea.vmem [#allocation2], 2
    %635 = vst [vmem:[%s634] sm:$0x3] %v568
    %s636 = scalar_lea.vmem [#allocation2], 4
    %637 = vst [vmem:[%s636] sm:$0x3] %v628
    // Predicated region
    $region14: #{_forward_all.1} parent=1 // pred_check
      _
    $region15: #{_forward_all.1} parent=1 // pred_check_branch
      %639 = sbr.rel (0) target = $region17
    $region16: #{_forward_all.1} parent=1 // pred_region
      %s641 = ssub.s32 96, 96
      %642 = vsyncadd [#allocation3], %s641
      %s643 = sshll.u32 [#allocation2], 4
      %s644 = int_to_ptr.vmem [resolvable:$true] %s643
      %649 = dma.vmem_to_hbm [thread:$0]  %s644, 96, %s3, [#allocation3], 32, 32, 2
    $region17: #{_forward_all.1} parent=1 // pred_fallthru
      _
    // Predicated region
    $region18: #{_forward_all.1} parent=1 // pred_check
      _
    $region19: #{_forward_all.1} parent=1 // pred_check_branch
      %651 = sbr.rel (0) target = $region21
    $region20: #{_forward_all.1} parent=1 // pred_region
      %652 = dma.done [#allocation3], 96
    $region21: #{_forward_all.1} parent=1 // pred_fallthru
      _
    %653 = vsyncpa [#allocation3], 1

</llo_original>
